<compile_context>
chip_gen: v5e
topology: v5e:2x2
jax: 0.10.0
libtpu: 0.0.40
codegen_flags: <defaults>
</compile_context>

<pallas_src>
import jax
import jax.numpy as jnp
from jax.experimental import pallas as pl
from jax.experimental.pallas import tpu as pltpu


def _round_up(a, m):
    return (a + m - 1) // m * m


# --------------------------- pass A: conv1 + stats ---------------------------
def _make_conv_stats_kernel(*, cp_in, tile, offs):
    def kernel(xc_ref, xr_ref, m_ref, w_ref, z_ref, s1_ref, s2_ref, xwin, col):
        # stitch tile + right halo into one contiguous window
        xwin[:, :tile] = xc_ref[...]
        xwin[:, tile:] = xr_ref[...]
        # im2col: nine lane-shifted views stacked along sublanes
        for t, off in enumerate(offs):
            col[t * cp_in:(t + 1) * cp_in, :] = xwin[:, off:off + tile]
        z = jnp.dot(w_ref[...], col[...], preferred_element_type=jnp.float32)
        m = m_ref[...]
        zm = z * m
        s1_ref[0] = jnp.sum(zm, axis=1, keepdims=True)
        s2_ref[0] = jnp.sum(zm * z, axis=1, keepdims=True)
        z_ref[...] = z
    return kernel


# ---------------- pass B: folded BN1 + ReLU + conv2 + stats ------------------
def _make_bn_conv_stats_kernel(*, cp, tile, hb, shift, offs):
    base = hb - shift  # window offset of tap off=0 for output lane 0

    def kernel(zl_ref, zc_ref, zr_ref, ml_ref, mc_ref, mr_ref,
               sc_ref, sh_ref, w_ref, z_ref, s1_ref, s2_ref, buf, col):
        sc = sc_ref[...]
        sh = sh_ref[...]

        def staged(z_in, m_in):
            a = jnp.maximum(z_in * sc + sh, 0.0)          # folded BN1 + ReLU
            # halo pad regions can contain uninitialized data -> select, not mul
            return jnp.where(m_in > 0.0, a, 0.0).astype(jnp.bfloat16)

        buf[:, :hb] = staged(zl_ref[...], ml_ref[...])
        buf[:, hb:hb + tile] = staged(zc_ref[...], mc_ref[...])
        buf[:, hb + tile:] = staged(zr_ref[...], mr_ref[...])

        for t, off in enumerate(offs):
            col[t * cp:(t + 1) * cp, :] = buf[:, base + off: base + off + tile]
        z = jnp.dot(w_ref[...], col[...], preferred_element_type=jnp.float32)
        m = mc_ref[...]
        zm = z * m
        s1_ref[0] = jnp.sum(zm, axis=1, keepdims=True)
        s2_ref[0] = jnp.sum(zm * z, axis=1, keepdims=True)
        z_ref[...] = z
    return kernel


# --------------------------------- wrapper -----------------------------------
def skip_block_up_forward(x, params, in_ch, out_ch, upsample=False,
                          skip_connections=True, tile_lanes=8192,
                          out_dtype=jnp.float32):
    """Forward pass of SkipBlockUP.  x: (N, in_ch, H, W) float32 NCHW."""
    assert not upsample  # TODO(synk): upsample path not implemented (see header)
    N, C, H, W = x.shape
    assert C == in_ch
    same_ch = (in_ch == out_ch)
    if skip_connections and not same_ch:
        assert in_ch == 2 * out_ch, "torch add requires in_ch - out_ch == out_ch"

    Hp, Wp = H + 2, W + 2
    S = N * Hp * Wp                       # flattened padded spatial size
    MAXOFF = 2 * Wp + 2                   # largest 3x3 tap offset (flattened)
    SHIFT = Wp + 1                        # base position q <-> padded position q+SHIFT
    Sv = S - MAXOFF                       # number of computed base positions
    HB = _round_up(MAXOFF, 128)           # lane-aligned halo width
    Cp_in = _round_up(in_ch, 16)          # bf16-tile aligned channel counts
    Cp_out = _round_up(out_ch, 16)
    offs = tuple(kh * Wp + kw for kh in range(3) for kw in range(3))
    count = float(N * H * W)
    eps = 1e-5

    # ---- VMEM budget & tile width (cap per generation, auto-shrink tile) ----
    try:
        vmem_cap = int(pltpu.get_tpu_info().vmem_capacity_bytes)
    except Exception:
        vmem_cap = 64 << 20               # v7x-safe fallback
    budget = vmem_cap - (8 << 20)

    def _per_tile_bytes(t):
        a = (2 * Cp_in * (t + HB) * 2          # x tile + halo, bf16, double buffered
             + 2 * t * 4                       # mask tile
             + Cp_out * 9 * Cp_in * 2          # packed w1 (single buffered)
             + 2 * (Cp_out * t * 4 + Cp_out * 8)   # z1 + stats outputs
             + Cp_in * (t + HB) * 2            # xwin scratch
             + 9 * Cp_in * t * 2)              # im2col scratch
        b = 0
        if same_ch:
            b = (2 * Cp_out * (t + 2 * HB) * 4     # z1 tile + halos, f32
                 + 2 * (t + 2 * HB) * 4            # mask tile + halos
                 + 2 * Cp_out * 8                  # scale/shift
                 + Cp_out * 9 * Cp_out * 2         # packed w2
                 + 2 * (Cp_out * t * 4 + Cp_out * 8)
                 + Cp_out * (t + 2 * HB) * 2       # staged window scratch
                 + 9 * Cp_out * t * 2)             # im2col scratch
        return max(a, b)

    TILE = max(HB, min(_round_up(tile_lanes, HB), _round_up(Sv, HB)))
    while TILE > HB and _per_tile_bytes(TILE) + (4 << 20) > budget:
        TILE = max(HB, (TILE // 2) // HB * HB)
    nt = -(-Sv // TILE)                   # number of lane tiles
    R = TILE // HB
    vmem_limit = int(min(max(_per_tile_bytes(TILE) + (4 << 20), 16 << 20), budget))

    L_x = nt * TILE + HB                  # padded x lanes (>= S)
    L_z = TILE + nt * TILE + HB           # z1 storage: [pad TILE][nt*TILE][pad HB]
    L_m = TILE + nt * TILE + HB

    # ---- layout conversion & parameter packing (plain JAX glue) -------------
    xp = jnp.pad(x, ((0, 0), (0, 0), (1, 1), (1, 1)))
    xf = xp.transpose(1, 0, 2, 3).reshape(in_ch, S)
    xf = jnp.pad(xf, ((0, Cp_in - in_ch), (0, L_x - S))).astype(jnp.bfloat16)

    # valid-position mask over base coords, with zero halo pads on both sides
    q = jnp.arange(nt * TILE)
    loc = q % (Hp * Wp)
    mask_c = (((loc // Wp) < H) & ((loc % Wp) < W) & (q < Sv)).astype(jnp.float32)
    mask_ext = jnp.concatenate(
        [jnp.zeros((TILE,), jnp.float32), mask_c,
         jnp.zeros((HB,), jnp.float32)])[None, :]
    assert mask_ext.shape[1] == L_m

    def pack_weight(Wt):
        # ConvTranspose2d weight (src, dst, 3, 3) == conv with flipped/transposed
        # taps; packed into ONE (Cp_out, 9*Cp_src) bf16 matrix matching the
        # im2col row order k = t*Cp_src + c.
        src, dst = Wt.shape[0], Wt.shape[1]
        cps = _round_up(src, 16)
        W9 = jnp.flip(Wt, axis=(2, 3)).transpose(2, 3, 1, 0).reshape(9, dst, src)
        W9 = jnp.pad(W9, ((0, 0), (0, Cp_out - dst), (0, cps - src)))
        return W9.transpose(1, 0, 2).reshape(Cp_out, 9 * cps).astype(jnp.bfloat16)

    def pad_ch(v):
        return jnp.pad(v, (0, Cp_out - v.shape[0])).astype(jnp.float32)

    def const_spec(shape):                 # constant operands: single-buffered
        return pl.BlockSpec(shape, lambda i: (0,) * len(shape),
                            pipeline_mode=pl.Buffered(1))

    cparams = pltpu.CompilerParams(dimension_semantics=("parallel",),
                                   vmem_limit_bytes=vmem_limit)

    def bn_affine(s1_arr, s2_arr, g, be):
        s1 = jnp.sum(s1_arr[:, :, 0], axis=0)
        s2 = jnp.sum(s2_arr[:, :, 0], axis=0)
        mean = s1 / count
        var = s2 / count - mean * mean
        scale = pad_ch(g) * jax.lax.rsqrt(var + eps)
        shift = pad_ch(be) - mean * scale
        return scale, shift

    # ---- pass A: conv1 + BN1 partial stats ----------------------------------
    w1p = pack_weight(params["Wt1"])
    kernel_a = _make_conv_stats_kernel(cp_in=Cp_in, tile=TILE, offs=offs)
    z1, a_s1, a_s2 = pl.pallas_call(
        kernel_a,
        out_shape=(jax.ShapeDtypeStruct((Cp_out, L_z), jnp.float32),
                   jax.ShapeDtypeStruct((nt, Cp_out, 1), jnp.float32),
                   jax.ShapeDtypeStruct((nt, Cp_out, 1), jnp.float32)),
        grid=(nt,),
        in_specs=[
            pl.BlockSpec((Cp_in, TILE), lambda i: (0, i)),
            pl.BlockSpec((Cp_in, HB), lambda i: (0, (i + 1) * R)),
            pl.BlockSpec((1, TILE), lambda i: (0, i + 1)),
            const_spec((Cp_out, 9 * Cp_in)),
        ],
        out_specs=(pl.BlockSpec((Cp_out, TILE), lambda i: (0, i + 1)),
                   pl.BlockSpec((1, Cp_out, 1), lambda i: (i, 0, 0)),
                   pl.BlockSpec((1, Cp_out, 1), lambda i: (i, 0, 0))),
        scratch_shapes=[pltpu.VMEM((Cp_in, TILE + HB), jnp.bfloat16),
                        pltpu.VMEM((9 * Cp_in, TILE), jnp.bfloat16)],
        compiler_params=cparams,
    )(xf, xf, mask_ext, w1p)

    scale1, shift1 = bn_affine(a_s1, a_s2, params["g1"], params["be1"])

    if same_ch:
        # ---- pass B: BN1+ReLU (folded) + conv2 + BN2 partial stats ----------
        w2p = pack_weight(params["Wt2"])
        kernel_b = _make_bn_conv_stats_kernel(cp=Cp_out, tile=TILE, hb=HB,
                                              shift=SHIFT, offs=offs)
        z2, b_s1, b_s2 = pl.pallas_call(
            kernel_b,
            out_shape=(jax.ShapeDtypeStruct((Cp_out, nt * TILE), jnp.float32),
                       jax.ShapeDtypeStruct((nt, Cp_out, 1), jnp.float32),
                       jax.ShapeDtypeStruct((nt, Cp_out, 1), jnp.float32)),
            grid=(nt,),
            in_specs=[
                pl.BlockSpec((Cp_out, HB), lambda i: (0, (i + 1) * R - 1)),
                pl.BlockSpec((Cp_out, TILE), lambda i: (0, i + 1)),
                pl.BlockSpec((Cp_out, HB), lambda i: (0, (i + 2) * R)),
                pl.BlockSpec((1, HB), lambda i: (0, (i + 1) * R - 1)),
                pl.BlockSpec((1, TILE), lambda i: (0, i + 1)),
                pl.BlockSpec((1, HB), lambda i: (0, (i + 2) * R)),
                const_spec((Cp_out, 1)),
                const_spec((Cp_out, 1)),
                const_spec((Cp_out, 9 * Cp_out)),
            ],
            out_specs=(pl.BlockSpec((Cp_out, TILE), lambda i: (0, i)),
                       pl.BlockSpec((1, Cp_out, 1), lambda i: (i, 0, 0)),
                       pl.BlockSpec((1, Cp_out, 1), lambda i: (i, 0, 0))),
            scratch_shapes=[pltpu.VMEM((Cp_out, TILE + 2 * HB), jnp.bfloat16),
                            pltpu.VMEM((9 * Cp_out, TILE), jnp.bfloat16)],
            compiler_params=cparams,
        )(z1, z1, z1, mask_ext, mask_ext, mask_ext,
          scale1.reshape(-1, 1), shift1.reshape(-1, 1), w2p)
        scale, shift = bn_affine(b_s1, b_s2, params["g2"], params["be2"])
        zf, base_off = z2, 0
    else:
        scale, shift = scale1, shift1
        zf, base_off = z1, TILE

    # ---- final BN normalize + ReLU + skip (fuses with the NCHW gather) ------
    gather_idx = (jnp.arange(N)[:, None, None] * (Hp * Wp)
                  + jnp.arange(H)[None, :, None] * Wp
                  + jnp.arange(W)[None, None, :]).reshape(-1) + base_off
    zv = jnp.take(zf[:out_ch], gather_idx, axis=1)
    y = zv.reshape(out_ch, N, H, W).transpose(1, 0, 2, 3)
    y = jnp.maximum(y * scale[:out_ch][None, :, None, None]
                    + shift[:out_ch][None, :, None, None], 0.0)
    if skip_connections:
        y = y + (x if same_ch else x[:, out_ch:, :, :])
    return y.astype(out_dtype)


# ---------------- pure-JAX reference for verification ------------------------
def ref_forward(x, params, in_ch, out_ch, skip_connections=True,
                operand_dtype=jnp.float32):
    """operand_dtype=bfloat16 reproduces the kernel's bf16 matmul-operand
    quantization (accumulation / BN / skip stay f32); float32 = exact module."""
    def rnd(a):
        return a.astype(operand_dtype).astype(jnp.float32)

    def convT(v, Wt, b):
        Wc = jnp.flip(Wt, axis=(2, 3)).transpose(1, 0, 2, 3)   # OIHW
        y = jax.lax.conv_general_dilated(
            rnd(v), rnd(Wc), window_strides=(1, 1), padding=((1, 1), (1, 1)),
            dimension_numbers=("NCHW", "OIHW", "NCHW"),
            precision=jax.lax.Precision.HIGHEST)
        return y + b[None, :, None, None]

    def bn(v, g, b):
        mean = v.mean(axis=(0, 2, 3), keepdims=True)
        var = ((v - mean) ** 2).mean(axis=(0, 2, 3), keepdims=True)
        return ((v - mean) * jax.lax.rsqrt(var + 1e-5)
                * g[None, :, None, None] + b[None, :, None, None])

    out = jax.nn.relu(bn(convT(x, params["Wt1"], params["b1"]),
                         params["g1"], params["be1"]))
    if in_ch == out_ch:
        out = jax.nn.relu(bn(convT(out, params["Wt2"], params["b2"]),
                             params["g2"], params["be2"]))
    if skip_connections:
        out = out + (x if in_ch == out_ch else x[:, out_ch:, :, :])
    return out


if __name__ == "__main__":
    key = jax.random.PRNGKey(0)
    ks = jax.random.split(key, 6)

    # Config 1: in_ch == out_ch (two ConvTranspose layers + identity skip);
    # tile_lanes=256 forces a multi-tile grid to exercise the halo path.
    N, C, H, W = 2, 4, 16, 16
    params = dict(
        Wt1=jax.random.uniform(ks[0], (C, C, 3, 3), jnp.float32, -0.3, 0.3),
        b1=jax.random.uniform(ks[1], (C,), jnp.float32, -0.1, 0.1),
        Wt2=jax.random.uniform(ks[2], (C, C, 3, 3), jnp.float32, -0.3, 0.3),
        b2=jax.random.uniform(ks[3], (C,), jnp.float32, -0.1, 0.1),
        g1=jnp.ones((C,), jnp.float32), be1=jnp.zeros((C,), jnp.float32),
        g2=jnp.ones((C,), jnp.float32), be2=jnp.zeros((C,), jnp.float32),
    )
    x = jax.random.normal(ks[4], (N, C, H, W), jnp.float32)

    y = jax.block_until_ready(skip_block_up_forward(x, params, C, C,
                                                    tile_lanes=256))
    err1_bf = float(jnp.max(jnp.abs(
        y - ref_forward(x, params, C, C, operand_dtype=jnp.bfloat16))))
    err1_f32 = float(jnp.max(jnp.abs(y - ref_forward(x, params, C, C))))

    # Config 2: in_ch == 2*out_ch (single conv + channel-sliced skip), 1 tile.
    in2, out2 = 8, 4
    params2 = dict(
        Wt1=jax.random.uniform(ks[5], (in2, out2, 3, 3), jnp.float32, -0.3, 0.3),
        b1=jnp.zeros((out2,), jnp.float32),
        Wt2=jnp.zeros((in2, out2, 3, 3), jnp.float32),   # unused on this branch
        b2=jnp.zeros((out2,), jnp.float32),
        g1=jnp.ones((out2,), jnp.float32), be1=jnp.zeros((out2,), jnp.float32),
        g2=jnp.ones((out2,), jnp.float32), be2=jnp.zeros((out2,), jnp.float32),
    )
    x2 = jax.random.normal(jax.random.PRNGKey(1), (N, in2, H, W), jnp.float32)
    y2 = jax.block_until_ready(skip_block_up_forward(x2, params2, in2, out2))
    err2_bf = float(jnp.max(jnp.abs(
        y2 - ref_forward(x2, params2, in2, out2, operand_dtype=jnp.bfloat16))))
    err2_f32 = float(jnp.max(jnp.abs(y2 - ref_forward(x2, params2, in2, out2))))

    assert y.shape == (N, C, H, W) and y2.shape == (N, out2, H, W)
    # tight tolerance against the matched-precision reference (kernel structure)
    assert err1_bf < 1e-2 and err2_bf < 1e-2, (err1_bf, err2_bf)
    # loose envelope against the exact f32 module (bf16 matmul operands)
    assert err1_f32 < 1e-1 and err2_f32 < 1e-1, (err1_f32, err2_f32)
    print("KERNEL_OK")
</pallas_src>

<mosaic_0001>
module attributes {stable_mosaic.version = 11 : i64} {
  func.func @kernel(%arg0: i32, %arg1: memref<16x256xbf16, #tpu.memory_space<vmem>>, %arg2: memref<16x128xbf16, #tpu.memory_space<vmem>>, %arg3: memref<1x256xf32, #tpu.memory_space<vmem>>, %arg4: memref<16x144xbf16, #tpu.memory_space<vmem>>, %arg5: memref<16x256xf32, #tpu.memory_space<vmem>>, %arg6: memref<1x16x1xf32, #tpu.memory_space<vmem>>, %arg7: memref<1x16x1xf32, #tpu.memory_space<vmem>>, %arg8: memref<16x384xbf16, #tpu.memory_space<vmem>>, %arg9: memref<144x256xbf16, #tpu.memory_space<vmem>>) attributes {dimension_semantics = [#tpu.dimension_semantics<parallel>], iteration_bounds = array<i64: 3>, scalar_prefetch = 0 : i64, scratch_operands = 2 : i64, tpu.core_type = #tpu.core_type<tc>, window_params = [{transform_indices = @transform_0, window_bounds = array<i64: 16, 256>}, {transform_indices = @transform_1, window_bounds = array<i64: 16, 128>}, {transform_indices = @transform_2, window_bounds = array<i64: 1, 256>}, {pipeline_mode = #tpu.pipeline_mode<synchronous>, transform_indices = @transform_3, window_bounds = array<i64: 16, 144>}, {transform_indices = @transform_4, window_bounds = array<i64: 16, 256>}, {transform_indices = @transform_5, window_bounds = array<i64: 1, 16, 1>}, {transform_indices = @transform_6, window_bounds = array<i64: 1, 16, 1>}]} {
    %c0 = arith.constant 0 : index
    %c0_0 = arith.constant 0 : index
    %0 = vector.load %arg1[%c0, %c0_0] : memref<16x256xbf16, #tpu.memory_space<vmem>>, vector<16x256xbf16>
    %c0_1 = arith.constant 0 : index
    %c0_2 = arith.constant 0 : index
    %1 = vector.load %arg8[%c0_1, %c0_2] : memref<16x384xbf16, #tpu.memory_space<vmem>>, vector<16x256xbf16>
    tpu.vector_store %arg8[%c0_1, %c0_2], %0 {strides = array<i32>} : memref<16x384xbf16, #tpu.memory_space<vmem>>, vector<16x256xbf16>,
    %c0_3 = arith.constant 0 : index
    %c0_4 = arith.constant 0 : index
    %2 = vector.load %arg2[%c0_3, %c0_4] : memref<16x128xbf16, #tpu.memory_space<vmem>>, vector<16x128xbf16>
    %c0_5 = arith.constant 0 : index
    %c256 = arith.constant 256 : index
    %3 = vector.load %arg8[%c0_5, %c256] : memref<16x384xbf16, #tpu.memory_space<vmem>>, vector<16x128xbf16>
    tpu.vector_store %arg8[%c0_5, %c256], %2 {strides = array<i32>} : memref<16x384xbf16, #tpu.memory_space<vmem>>, vector<16x128xbf16>,
    %c0_6 = arith.constant 0 : index
    %c0_7 = arith.constant 0 : index
    %4 = vector.load %arg8[%c0_6, %c0_7] : memref<16x384xbf16, #tpu.memory_space<vmem>>, vector<16x256xbf16>
    %c0_8 = arith.constant 0 : index
    %c0_9 = arith.constant 0 : index
    %5 = vector.load %arg9[%c0_8, %c0_9] : memref<144x256xbf16, #tpu.memory_space<vmem>>, vector<16x256xbf16>
    tpu.vector_store %arg9[%c0_8, %c0_9], %4 {strides = array<i32>} : memref<144x256xbf16, #tpu.memory_space<vmem>>, vector<16x256xbf16>,
    %c0_10 = arith.constant 0 : index
    %c1 = arith.constant 1 : index
    %6 = vector.load %arg8[%c0_10, %c1] : memref<16x384xbf16, #tpu.memory_space<vmem>>, vector<16x256xbf16>
    %c16 = arith.constant 16 : index
    %c0_11 = arith.constant 0 : index
    %7 = vector.load %arg9[%c16, %c0_11] : memref<144x256xbf16, #tpu.memory_space<vmem>>, vector<16x256xbf16>
    tpu.vector_store %arg9[%c16, %c0_11], %6 {strides = array<i32>} : memref<144x256xbf16, #tpu.memory_space<vmem>>, vector<16x256xbf16>,
    %c0_12 = arith.constant 0 : index
    %c2 = arith.constant 2 : index
    %8 = vector.load %arg8[%c0_12, %c2] : memref<16x384xbf16, #tpu.memory_space<vmem>>, vector<16x256xbf16>
    %c32 = arith.constant 32 : index
    %c0_13 = arith.constant 0 : index
    %9 = vector.load %arg9[%c32, %c0_13] : memref<144x256xbf16, #tpu.memory_space<vmem>>, vector<16x256xbf16>
    tpu.vector_store %arg9[%c32, %c0_13], %8 {strides = array<i32>} : memref<144x256xbf16, #tpu.memory_space<vmem>>, vector<16x256xbf16>,
    %c0_14 = arith.constant 0 : index
    %c18 = arith.constant 18 : index
    %10 = vector.load %arg8[%c0_14, %c18] : memref<16x384xbf16, #tpu.memory_space<vmem>>, vector<16x256xbf16>
    %c48 = arith.constant 48 : index
    %c0_15 = arith.constant 0 : index
    %11 = vector.load %arg9[%c48, %c0_15] : memref<144x256xbf16, #tpu.memory_space<vmem>>, vector<16x256xbf16>
    tpu.vector_store %arg9[%c48, %c0_15], %10 {strides = array<i32>} : memref<144x256xbf16, #tpu.memory_space<vmem>>, vector<16x256xbf16>,
    %c0_16 = arith.constant 0 : index
    %c19 = arith.constant 19 : index
    %12 = vector.load %arg8[%c0_16, %c19] : memref<16x384xbf16, #tpu.memory_space<vmem>>, vector<16x256xbf16>
    %c64 = arith.constant 64 : index
    %c0_17 = arith.constant 0 : index
    %13 = vector.load %arg9[%c64, %c0_17] : memref<144x256xbf16, #tpu.memory_space<vmem>>, vector<16x256xbf16>
    tpu.vector_store %arg9[%c64, %c0_17], %12 {strides = array<i32>} : memref<144x256xbf16, #tpu.memory_space<vmem>>, vector<16x256xbf16>,
    %c0_18 = arith.constant 0 : index
    %c20 = arith.constant 20 : index
    %14 = vector.load %arg8[%c0_18, %c20] : memref<16x384xbf16, #tpu.memory_space<vmem>>, vector<16x256xbf16>
    %c80 = arith.constant 80 : index
    %c0_19 = arith.constant 0 : index
    %15 = vector.load %arg9[%c80, %c0_19] : memref<144x256xbf16, #tpu.memory_space<vmem>>, vector<16x256xbf16>
    tpu.vector_store %arg9[%c80, %c0_19], %14 {strides = array<i32>} : memref<144x256xbf16, #tpu.memory_space<vmem>>, vector<16x256xbf16>,
    %c0_20 = arith.constant 0 : index
    %c36 = arith.constant 36 : index
    %16 = vector.load %arg8[%c0_20, %c36] : memref<16x384xbf16, #tpu.memory_space<vmem>>, vector<16x256xbf16>
    %c96 = arith.constant 96 : index
    %c0_21 = arith.constant 0 : index
    %17 = vector.load %arg9[%c96, %c0_21] : memref<144x256xbf16, #tpu.memory_space<vmem>>, vector<16x256xbf16>
    tpu.vector_store %arg9[%c96, %c0_21], %16 {strides = array<i32>} : memref<144x256xbf16, #tpu.memory_space<vmem>>, vector<16x256xbf16>,
    %c0_22 = arith.constant 0 : index
    %c37 = arith.constant 37 : index
    %18 = vector.load %arg8[%c0_22, %c37] : memref<16x384xbf16, #tpu.memory_space<vmem>>, vector<16x256xbf16>
    %c112 = arith.constant 112 : index
    %c0_23 = arith.constant 0 : index
    %19 = vector.load %arg9[%c112, %c0_23] : memref<144x256xbf16, #tpu.memory_space<vmem>>, vector<16x256xbf16>
    tpu.vector_store %arg9[%c112, %c0_23], %18 {strides = array<i32>} : memref<144x256xbf16, #tpu.memory_space<vmem>>, vector<16x256xbf16>,
    %c0_24 = arith.constant 0 : index
    %c38 = arith.constant 38 : index
    %20 = vector.load %arg8[%c0_24, %c38] : memref<16x384xbf16, #tpu.memory_space<vmem>>, vector<16x256xbf16>
    %c128 = arith.constant 128 : index
    %c0_25 = arith.constant 0 : index
    %21 = vector.load %arg9[%c128, %c0_25] : memref<144x256xbf16, #tpu.memory_space<vmem>>, vector<16x256xbf16>
    tpu.vector_store %arg9[%c128, %c0_25], %20 {strides = array<i32>} : memref<144x256xbf16, #tpu.memory_space<vmem>>, vector<16x256xbf16>,
    %c0_26 = arith.constant 0 : index
    %c0_27 = arith.constant 0 : index
    %22 = vector.load %arg4[%c0_26, %c0_27] : memref<16x144xbf16, #tpu.memory_space<vmem>>, vector<16x144xbf16>
    %c0_28 = arith.constant 0 : index
    %c0_29 = arith.constant 0 : index
    %23 = vector.load %arg9[%c0_28, %c0_29] : memref<144x256xbf16, #tpu.memory_space<vmem>>, vector<144x256xbf16>
    %cst = arith.constant dense<0.000000e+00> : vector<16x256xf32>
    %24 = tpu.matmul %22, %23, %cst {dimension_numbers = #tpu.dot_dimension_numbers<[1], [0], [0], [1], [0, 0, 1, 1], [], []>} : vector<16x144xbf16>, vector<144x256xbf16>, vector<16x256xf32> -> vector<16x256xf32>
    %c0_30 = arith.constant 0 : index
    %c0_31 = arith.constant 0 : index
    %25 = vector.load %arg3[%c0_30, %c0_31] : memref<1x256xf32, #tpu.memory_space<vmem>>, vector<1x256xf32>
    %26 = vector.broadcast %25 : vector<1x256xf32> to vector<16x256xf32>
    %27 = arith.mulf %24, %26 : vector<16x256xf32>
    %cst_32 = arith.constant dense<0.000000e+00> : vector<16xf32>
    %28 = vector.multi_reduction <add>, %27, %cst_32 [1] : vector<16x256xf32> to vector<16xf32>
    %29 = vector.shape_cast %28 : vector<16xf32> to vector<16x1xf32>
    %c0_33 = arith.constant 0 : index
    %c0_34 = arith.constant 0 : index
    %c0_35 = arith.constant 0 : index
    %30 = vector.load %arg6[%c0_33, %c0_34, %c0_35] : memref<1x16x1xf32, #tpu.memory_space<vmem>>, vector<1x16x1xf32>
    %31 = vector.shape_cast %30 : vector<1x16x1xf32> to vector<16x1xf32>
    %32 = vector.shape_cast %29 : vector<16x1xf32> to vector<1x16x1xf32>
    tpu.vector_store %arg6[%c0_33, %c0_34, %c0_35], %32 {strides = array<i32>} : memref<1x16x1xf32, #tpu.memory_space<vmem>>, vector<1x16x1xf32>,
    %33 = arith.mulf %27, %24 : vector<16x256xf32>
    %cst_36 = arith.constant dense<0.000000e+00> : vector<16xf32>
    %34 = vector.multi_reduction <add>, %33, %cst_36 [1] : vector<16x256xf32> to vector<16xf32>
    %35 = vector.shape_cast %34 : vector<16xf32> to vector<16x1xf32>
    %c0_37 = arith.constant 0 : index
    %c0_38 = arith.constant 0 : index
    %c0_39 = arith.constant 0 : index
    %36 = vector.load %arg7[%c0_37, %c0_38, %c0_39] : memref<1x16x1xf32, #tpu.memory_space<vmem>>, vector<1x16x1xf32>
    %37 = vector.shape_cast %36 : vector<1x16x1xf32> to vector<16x1xf32>
    %38 = vector.shape_cast %35 : vector<16x1xf32> to vector<1x16x1xf32>
    tpu.vector_store %arg7[%c0_37, %c0_38, %c0_39], %38 {strides = array<i32>} : memref<1x16x1xf32, #tpu.memory_space<vmem>>, vector<1x16x1xf32>,
    %c0_40 = arith.constant 0 : index
    %c0_41 = arith.constant 0 : index
    %39 = vector.load %arg5[%c0_40, %c0_41] : memref<16x256xf32, #tpu.memory_space<vmem>>, vector<16x256xf32>
    tpu.vector_store %arg5[%c0_40, %c0_41], %24 {strides = array<i32>} : memref<16x256xf32, #tpu.memory_space<vmem>>, vector<16x256xf32>,
    return
  }
  func.func @transform_0(%arg0: i32) -> (i32, i32) {
    %c0_i32 = arith.constant 0 : i32
    %c0_i32_0 = arith.constant 0 : i32
    return %c0_i32, %arg0 : i32, i32
  }
  func.func @transform_1(%arg0: i32) -> (i32, i32) {
    %c1_i32 = arith.constant 1 : i32
    %0 = arith.addi %arg0, %c1_i32 : i32
    %c2_i32 = arith.constant 2 : i32
    %1 = arith.muli %0, %c2_i32 : i32
    %c0_i32 = arith.constant 0 : i32
    %c0_i32_0 = arith.constant 0 : i32
    return %c0_i32, %1 : i32, i32
  }
  func.func @transform_2(%arg0: i32) -> (i32, i32) {
    %c1_i32 = arith.constant 1 : i32
    %0 = arith.addi %arg0, %c1_i32 : i32
    %c0_i32 = arith.constant 0 : i32
    %c0_i32_0 = arith.constant 0 : i32
    return %c0_i32, %0 : i32, i32
  }
  func.func @transform_3(%arg0: i32) -> (i32, i32) {
    %c0_i32 = arith.constant 0 : i32
    %c0_i32_0 = arith.constant 0 : i32
    %c0_i32_1 = arith.constant 0 : i32
    return %c0_i32, %c0_i32_0 : i32, i32
  }
  func.func @transform_4(%arg0: i32) -> (i32, i32) {
    %c1_i32 = arith.constant 1 : i32
    %0 = arith.addi %arg0, %c1_i32 : i32
    %c0_i32 = arith.constant 0 : i32
    %c0_i32_0 = arith.constant 0 : i32
    return %c0_i32, %0 : i32, i32
  }
  func.func @transform_5(%arg0: i32) -> (i32, i32, i32) {
    %c0_i32 = arith.constant 0 : i32
    %c0_i32_0 = arith.constant 0 : i32
    %c0_i32_1 = arith.constant 0 : i32
    return %arg0, %c0_i32, %c0_i32_0 : i32, i32, i32
  }
  func.func @transform_6(%arg0: i32) -> (i32, i32, i32) {
    %c0_i32 = arith.constant 0 : i32
    %c0_i32_0 = arith.constant 0 : i32
    %c0_i32_1 = arith.constant 0 : i32
    return %arg0, %c0_i32, %c0_i32_0 : i32, i32, i32
  }
}

</mosaic_0001>

<llo_original>
// kernel: tpu_custom_call.1
$region0: #{tpu_custom_call.1}
  #allocation0 [shape = 'u32[]', space=smem, size = 0x4, offset = 0x4, fixed_abs, tag = 'smem constant byte address 0x4 - core index']
  #allocation1 [shape = 'u32[72,128]{1,0:T(1,128)}', space=vmem, size = 0x9000, scoped, tag = 'internal scratch']
  #allocation2 [shape = 'bf16[16,384]{1,0:T(8,128)(2,1)}', space=vmem, size = 0x3000, scoped, tag = 'scratch operand']
  #allocation3 [shape = 'bf16[144,256]{1,0:T(8,128)(2,1)}', space=vmem, size = 0x12000, scoped, tag = 'scratch operand']
  %s0 = inlined_call_operand.hbm [shape: bf16[16,896], index: 0, kind: input, shape index: {}]
  %s1 = inlined_call_operand.hbm [shape: bf16[16,896], index: 1, kind: input, shape index: {}]
  %s2 = inlined_call_operand.hbm [shape: f32[1,1152], index: 2, kind: input, shape index: {}]
  %s3 = inlined_call_operand.hbm [shape: bf16[16,144], index: 3, kind: input, shape index: {}]
  %s4 = inlined_call_operand.hbm [shape: f32[16,1152], index: 4, kind: output, shape index: {0}]
  %s5 = inlined_call_operand.vmem [shape: f32[3,16,1], index: 5, kind: output, shape index: {1}]
  %s6 = inlined_call_operand.vmem [shape: f32[3,16,1], index: 6, kind: output, shape index: {2}]
  %7 = xla_tuple %s4, %s5, %s6
  %s8 = sld [smem:[#allocation0]]
  $region81: #{tpu_custom_call.1} parent=0
    _
  %s10 = ssub.s32 1, %s8
  %s11 = scalar_select 0, %s10, %s8
  $region1: #{tpu_custom_call.1} parent=0
    #allocation4 [shape = 'u8[16384]{0}', space=vmem, size = 0x4000, scoped, tag = 'input window, operand 0']
    #allocation5 [shape = 's32[2]{0}', space=sflag, size = 0x8, scoped, tag = 'scoped memory for tpu_custom_call.1']
    #allocation6 [shape = 's32[2]{0}', space=sflag, size = 0x8, scoped, tag = 'scoped memory for tpu_custom_call.1']
    #allocation7 [shape = 'u8[8192]{0}', space=vmem, size = 0x2000, scoped, tag = 'input window, operand 1']
    #allocation8 [shape = 's32[2]{0}', space=sflag, size = 0x8, scoped, tag = 'scoped memory for tpu_custom_call.1']
    #allocation9 [shape = 'u8[2048]{0}', space=vmem, size = 0x800, scoped, tag = 'input window, operand 2']
    #allocation10 [shape = 'u8[8192]{0}', space=vmem, size = 0x2000, scoped, tag = 'input window, operand 3, single buffered']
    #allocation11 [shape = 's32[1]{0}', space=sflag, size = 0x4, scoped, tag = 'scoped memory for tpu_custom_call.1']
    #allocation12 [shape = 'u8[32768]{0}', space=vmem, size = 0x8000, scoped, tag = 'output window, operand 0']
    %12 = vsyncpa [#allocation5], 0
    %s13 = scalar_lea.sflag [#allocation5], 1
    %14 = vsyncpa %s13, 0
    %15 = vsyncpa [#allocation8], 0
    %s16 = scalar_lea.sflag [#allocation8], 1
    %17 = vsyncpa %s16, 0
    %18 = vsyncpa [#allocation11], 0
    %19 = vsyncpa [#allocation6], 0
    %s20 = scalar_lea.sflag [#allocation6], 1
    %21 = vsyncpa %s20, 0
    loop: start=0, step=1, limit=5
    $region2: #{tpu_custom_call.1} parent=1 // loop_pre_header
      _
    $region3: #{tpu_custom_call.1} parent=1 // loop_header
      %s23 = sphi 0, %s27
      %p24 = scmp.ge.s32.totalorder %s23, 5
      %s33 = sphi 0, %s35
      %s36 = sphi 0, %s33
      %s37 = sphi 0, %s36
      %s53 = sphi 0, %s37
      %s63 = sphi 0, %s65
      %s66 = sphi 0, %s63
      %s67 = sphi 0, %s66
      %s83 = sphi 0, %s67
      %s91 = sphi 0, %s93
      %s94 = sphi 0, %s91
      %s95 = sphi 0, %s94
      %s111 = sphi 0, %s95
      %s115 = sphi 0, %s115
      %s117 = sphi 0, %s115
      %s118 = sphi 0, %s117
      %s132 = sphi 0, %s118
      %s140 = sphi 0, %s142
      %s143 = sphi 0, %s140
      %s144 = sphi 0, %s143
      %s160 = sphi 0, %s144
      %s166 = sphi 0, %s168
      %s169 = sphi 0, %s166
      %s170 = sphi 0, %s169
      %s186 = sphi 0, %s170
      %s192 = sphi 0, %s194
      %s195 = sphi 0, %s192
      %s196 = sphi 0, %s195
      %s212 = sphi 0, %s196
    $region4: #{tpu_custom_call.1} parent=1 // loop_header_branch
      %26 = sbr.rel (%p24) target = $region8
    $region5: #{tpu_custom_call.1} parent=1 // loop_body
      %s28 = ssub.s32 %s23, 1
      %s29 = ssub.s32 %s23, 2
      %s30 = sadd.s32 %s23, 1
      %s31 = ssub.s32 %s23, %s30
      %p32 = scmp.eq.s32.totalorder %s31, 0
      %s34 = sadd.s32 %s33, 1
      %s35 = scalar_select %p32, %s33, %s34
      %p38 = pneg %p32
      %p39 = scmp.eq.s32.totalorder %s23, 2
      %p40 = por %p38, %p39
      %p41 = scmp.ne.s32.totalorder %s33, %s36
      %p42 = scmp.eq.s32.totalorder %s23, 0
      %p43 = por %p41, %p42
      %p44 = scmp.ne.s32.totalorder %s33, %s36
      %p45 = scmp.eq.s32.totalorder %s28, 2
      %p46 = por %p44, %p45
      %p47 = scmp.ne.s32.totalorder %s36, %s37
      %p48 = scmp.eq.s32.totalorder %s28, 0
      %p49 = por %p47, %p48
      %p50 = scmp.ne.s32.totalorder %s36, %s37
      %p51 = scmp.eq.s32.totalorder %s29, 2
      %p52 = por %p50, %p51
      %p54 = scmp.ne.s32.totalorder %s37, %s53
      %p55 = scmp.eq.s32.totalorder %s29, 0
      %p56 = por %p54, %p55
      %s57 = sadd.s32 %s23, 1
      %s58 = smul.u32 %s57, 2
      %s59 = sadd.s32 %s30, 1
      %s60 = smul.u32 %s59, 2
      %s61 = ssub.s32 %s58, %s60
      %p62 = scmp.eq.s32.totalorder %s61, 0
      %s64 = sadd.s32 %s63, 1
      %s65 = scalar_select %p62, %s63, %s64
      %p68 = pneg %p62
      %p69 = scmp.eq.s32.totalorder %s23, 2
      %p70 = por %p68, %p69
      %p71 = scmp.ne.s32.totalorder %s63, %s66
      %p72 = scmp.eq.s32.totalorder %s23, 0
      %p73 = por %p71, %p72
      %p74 = scmp.ne.s32.totalorder %s63, %s66
      %p75 = scmp.eq.s32.totalorder %s28, 2
      %p76 = por %p74, %p75
      %p77 = scmp.ne.s32.totalorder %s66, %s67
      %p78 = scmp.eq.s32.totalorder %s28, 0
      %p79 = por %p77, %p78
      %p80 = scmp.ne.s32.totalorder %s66, %s67
      %p81 = scmp.eq.s32.totalorder %s29, 2
      %p82 = por %p80, %p81
      %p84 = scmp.ne.s32.totalorder %s67, %s83
      %p85 = scmp.eq.s32.totalorder %s29, 0
      %p86 = por %p84, %p85
      %s87 = sadd.s32 %s23, 1
      %s88 = sadd.s32 %s30, 1
      %s89 = ssub.s32 %s87, %s88
      %p90 = scmp.eq.s32.totalorder %s89, 0
      %s92 = sadd.s32 %s91, 1
      %s93 = scalar_select %p90, %s91, %s92
      %p96 = pneg %p90
      %p97 = scmp.eq.s32.totalorder %s23, 2
      %p98 = por %p96, %p97
      %p99 = scmp.ne.s32.totalorder %s91, %s94
      %p100 = scmp.eq.s32.totalorder %s23, 0
      %p101 = por %p99, %p100
      %p102 = scmp.ne.s32.totalorder %s91, %s94
      %p103 = scmp.eq.s32.totalorder %s28, 2
      %p104 = por %p102, %p103
      %p105 = scmp.ne.s32.totalorder %s94, %s95
      %p106 = scmp.eq.s32.totalorder %s28, 0
      %p107 = por %p105, %p106
      %p108 = scmp.ne.s32.totalorder %s94, %s95
      %p109 = scmp.eq.s32.totalorder %s29, 2
      %p110 = por %p108, %p109
      %p112 = scmp.ne.s32.totalorder %s95, %s111
      %p113 = scmp.eq.s32.totalorder %s29, 0
      %p114 = por %p112, %p113
      %s116 = sadd.s32 %s115, 1
      %p119 = scmp.eq.s32.totalorder %s23, 2
      %p120 = scmp.ne.s32.totalorder %s115, %s117
      %p121 = scmp.eq.s32.totalorder %s23, 0
      %p122 = por %p120, %p121
      %p123 = scmp.ne.s32.totalorder %s115, %s117
      %p124 = scmp.eq.s32.totalorder %s28, 2
      %p125 = por %p123, %p124
      %p126 = scmp.ne.s32.totalorder %s117, %s118
      %p127 = scmp.eq.s32.totalorder %s28, 0
      %p128 = por %p126, %p127
      %p129 = scmp.ne.s32.totalorder %s117, %s118
      %p130 = scmp.eq.s32.totalorder %s29, 2
      %p131 = por %p129, %p130
      %p133 = scmp.ne.s32.totalorder %s118, %s132
      %p134 = scmp.eq.s32.totalorder %s29, 0
      %p135 = por %p133, %p134
      %s136 = sadd.s32 %s23, 1
      %s137 = sadd.s32 %s30, 1
      %s138 = ssub.s32 %s136, %s137
      %p139 = scmp.eq.s32.totalorder %s138, 0
      %s141 = sadd.s32 %s140, 1
      %s142 = scalar_select %p139, %s140, %s141
      %p145 = pneg %p139
      %p146 = scmp.eq.s32.totalorder %s23, 2
      %p147 = por %p145, %p146
      %p148 = scmp.ne.s32.totalorder %s140, %s143
      %p149 = scmp.eq.s32.totalorder %s23, 0
      %p150 = por %p148, %p149
      %p151 = scmp.ne.s32.totalorder %s140, %s143
      %p152 = scmp.eq.s32.totalorder %s28, 2
      %p153 = por %p151, %p152
      %p154 = scmp.ne.s32.totalorder %s143, %s144
      %p155 = scmp.eq.s32.totalorder %s28, 0
      %p156 = por %p154, %p155
      %p157 = scmp.ne.s32.totalorder %s143, %s144
      %p158 = scmp.eq.s32.totalorder %s29, 2
      %p159 = por %p157, %p158
      %p161 = scmp.ne.s32.totalorder %s144, %s160
      %p162 = scmp.eq.s32.totalorder %s29, 0
      %p163 = por %p161, %p162
      %s164 = ssub.s32 %s23, %s30
      %p165 = scmp.eq.s32.totalorder %s164, 0
      %s167 = sadd.s32 %s166, 1
      %s168 = scalar_select %p165, %s166, %s167
      %p171 = pneg %p165
      %p172 = scmp.eq.s32.totalorder %s23, 2
      %p173 = por %p171, %p172
      %p174 = scmp.ne.s32.totalorder %s166, %s169
      %p175 = scmp.eq.s32.totalorder %s23, 0
      %p176 = por %p174, %p175
      %p177 = scmp.ne.s32.totalorder %s166, %s169
      %p178 = scmp.eq.s32.totalorder %s28, 2
      %p179 = por %p177, %p178
      %p180 = scmp.ne.s32.totalorder %s169, %s170
      %p181 = scmp.eq.s32.totalorder %s28, 0
      %p182 = por %p180, %p181
      %p183 = scmp.ne.s32.totalorder %s169, %s170
      %p184 = scmp.eq.s32.totalorder %s29, 2
      %p185 = por %p183, %p184
      %p187 = scmp.ne.s32.totalorder %s170, %s186
      %p188 = scmp.eq.s32.totalorder %s29, 0
      %p189 = por %p187, %p188
      %s190 = ssub.s32 %s23, %s30
      %p191 = scmp.eq.s32.totalorder %s190, 0
      %s193 = sadd.s32 %s192, 1
      %s194 = scalar_select %p191, %s192, %s193
      %p197 = pneg %p191
      %p198 = scmp.eq.s32.totalorder %s23, 2
      %p199 = por %p197, %p198
      %p200 = scmp.ne.s32.totalorder %s192, %s195
      %p201 = scmp.eq.s32.totalorder %s23, 0
      %p202 = por %p200, %p201
      %p203 = scmp.ne.s32.totalorder %s192, %s195
      %p204 = scmp.eq.s32.totalorder %s28, 2
      %p205 = por %p203, %p204
      %p206 = scmp.ne.s32.totalorder %s195, %s196
      %p207 = scmp.eq.s32.totalorder %s28, 0
      %p208 = por %p206, %p207
      %p209 = scmp.ne.s32.totalorder %s195, %s196
      %p210 = scmp.eq.s32.totalorder %s29, 2
      %p211 = por %p209, %p210
      %p213 = scmp.ne.s32.totalorder %s196, %s212
      %p214 = scmp.eq.s32.totalorder %s29, 0
      %p215 = por %p213, %p214
      %p216 = scmp.le.s32.totalorder 1, %s23
      %p217 = scmp.lt.s32.totalorder %s23, 4
      %p218 = pnand %p216, %p217
      %p219 = pneg %p218
      // Predicated region
      $region9: #{tpu_custom_call.1} parent=5 // pred_check
        _
      $region10: #{tpu_custom_call.1} parent=5 // pred_check_branch
        %221 = sbr.rel (%p218) target = $region12
      $region11: #{tpu_custom_call.1} parent=5 // pred_region
        %s222 = ssub.s32 %s23, 1
        // Predicated region
        $region13: #{tpu_custom_call.1} parent=11 // pred_check
          %p223 = pneg %p128
        $region14: #{tpu_custom_call.1} parent=11 // pred_check_branch
          %225 = sbr.rel (%p223) target = $region16
        $region15: #{tpu_custom_call.1} parent=11 // pred_region
          %227 = vsyncadd [#allocation11], 0
          %s228 = sshll.u32 %s3, 4
          %s229 = int_to_ptr.hbm [resolvable:$true] %s228
          %s230 = sshll.u32 [#allocation10], 4
          %s231 = int_to_ptr.vmem [resolvable:$true] %s230
          %236 = dma.hbm_to_vmem [thread:$0]  %s229, 256, %s231, [#allocation11], 128, 128, 8
        $region16: #{tpu_custom_call.1} parent=11 // pred_fallthru
          _
      $region12: #{tpu_custom_call.1} parent=5 // pred_fallthru
        _
      %p237 = scmp.lt.s32.totalorder %s23, 3
      // Predicated region
      $region17: #{tpu_custom_call.1} parent=5 // pred_check
        %p238 = pneg %p237
      $region18: #{tpu_custom_call.1} parent=5 // pred_check_branch
        %240 = sbr.rel (%p238) target = $region20
      $region19: #{tpu_custom_call.1} parent=5 // pred_region
        // Predicated region
        $region21: #{tpu_custom_call.1} parent=19 // pred_check
          %p241 = pneg %p43
        $region22: #{tpu_custom_call.1} parent=19 // pred_check_branch
          %243 = sbr.rel (%p241) target = $region24
        $region23: #{tpu_custom_call.1} parent=19 // pred_region
          %s244 = sand.u32 %s33, 1
          %s245 = scalar_lea.sflag [#allocation5], %s244
          %s246 = sand.u32 %s33, 1
          %s247 = smul.addr %s246, 16
          %s248 = scalar_lea.vmem [#allocation4], %s247
          %s249 = smul.u32 2, %s23
          %s250 = ssub.s32 7, %s249
          %p251 = scmp.lt.s32.totalorder %s250, 2
          %s252 = scalar_select %p251, %s250, 2
          %s253 = smul.u32 8, %s252
          %s254 = ssub.s32 16, %s253
          %s255 = sshll.u32 %s254, 4
          %256 = vsyncadd %s245, %s255
          %p257 = scmp.ne.s32.totalorder 0, %s253
          %s258 = smul.addr %s249, 4
          %s259 = scalar_lea.hbm %s0, %s258
          %s260 = smul.u32 %s252, 4
          %s261 = smul.u32 %s260, 2
          %s262 = sshll.u32 %s259, 4
          %s263 = int_to_ptr.hbm [resolvable:$true] %s262
          %s264 = sshll.u32 %s248, 4
          %s265 = int_to_ptr.vmem [resolvable:$true] %s264
          %s266 = sshll.u32 %s261, 4
          %270 = dma.hbm_to_vmem [thread:$0]  (%p257), %s263, %s266, %s265, %s245, 448, 128, %s260
        $region24: #{tpu_custom_call.1} parent=19 // pred_fallthru
          _
        // Predicated region
        $region25: #{tpu_custom_call.1} parent=19 // pred_check
          %p271 = pneg %p73
        $region26: #{tpu_custom_call.1} parent=19 // pred_check_branch
          %273 = sbr.rel (%p271) target = $region28
        $region27: #{tpu_custom_call.1} parent=19 // pred_region
          %s274 = sand.u32 %s23, 1
          %s275 = scalar_lea.sflag [#allocation8], %s274
          %s276 = sand.u32 %s63, 1
          %s277 = smul.addr %s276, 8
          %s278 = scalar_lea.vmem [#allocation7], %s277
          %s279 = sadd.s32 %s23, 1
          %s280 = smul.u32 %s279, 2
          %282 = vsyncadd %s275, 0
          %s283 = smul.addr %s280, 4
          %s284 = scalar_lea.hbm %s1, %s283
          %s285 = sshll.u32 %s284, 4
          %s286 = int_to_ptr.hbm [resolvable:$true] %s285
          %s287 = sshll.u32 %s278, 4
          %s288 = int_to_ptr.vmem [resolvable:$true] %s287
          %293 = dma.hbm_to_vmem [thread:$0]  %s286, 128, %s288, %s275, 448, 64, 4
        $region28: #{tpu_custom_call.1} parent=19 // pred_fallthru
          _
        // Predicated region
        $region29: #{tpu_custom_call.1} parent=19 // pred_check
          %p294 = pneg %p101
        $region30: #{tpu_custom_call.1} parent=19 // pred_check_branch
          %296 = sbr.rel (%p294) target = $region32
        $region31: #{tpu_custom_call.1} parent=19 // pred_region
          %s297 = sand.u32 %s23, 1
          %s298 = scalar_lea.sflag [#allocation8], %s297
          %s299 = sand.u32 %s91, 1
          %s300 = smul.addr %s299, 2
          %s301 = scalar_lea.vmem [#allocation9], %s300
          %s302 = sadd.s32 %s23, 1
          %s303 = smul.u32 2, %s302
          %s304 = ssub.s32 9, %s303
          %p305 = scmp.lt.s32.totalorder %s304, 2
          %s306 = scalar_select %p305, %s304, 2
          %s307 = ssub.s32 2, %s306
          %s308 = sshll.u32 %s307, 4
          %309 = vsyncadd %s298, %s308
          %p310 = scmp.ne.s32.totalorder 0, %s306
          %s311 = scalar_lea.hbm %s2, %s303
          %s312 = sshll.u32 %s306, 4
          %s313 = sshll.u32 %s311, 4
          %s314 = int_to_ptr.hbm [resolvable:$true] %s313
          %s315 = sshll.u32 %s301, 4
          %s316 = int_to_ptr.vmem [resolvable:$true] %s315
          %318 = dma.hbm_to_vmem [thread:$0]  (%p310), %s314, %s312, %s316, %s298
        $region32: #{tpu_custom_call.1} parent=19 // pred_fallthru
          _
      $region20: #{tpu_custom_call.1} parent=5 // pred_fallthru
        _
      %p319 = scmp.le.s32.totalorder 1, %s23
      %p320 = scmp.lt.s32.totalorder %s23, 4
      %p321 = pnand %p319, %p320
      %p322 = pneg %p321
      // Predicated region
      $region33: #{tpu_custom_call.1} parent=5 // pred_check
        _
      $region34: #{tpu_custom_call.1} parent=5 // pred_check_branch
        %324 = sbr.rel (%p321) target = $region36
      $region35: #{tpu_custom_call.1} parent=5 // pred_region
        %s325 = ssub.s32 %s23, 1
        %s326 = sand.u32 %s36, 1
        %s327 = scalar_lea.sflag [#allocation5], %s326
        %s328 = sand.u32 %s36, 1
        %s329 = smul.addr %s328, 16
        %s330 = scalar_lea.vmem [#allocation4], %s329
        // Predicated region
        $region37: #{tpu_custom_call.1} parent=35 // pred_check
          %p331 = pneg %p49
        $region38: #{tpu_custom_call.1} parent=35 // pred_check_branch
          %333 = sbr.rel (%p331) target = $region40
        $region39: #{tpu_custom_call.1} parent=35 // pred_region
          %335 = dma.done %s327, 256
        $region40: #{tpu_custom_call.1} parent=35 // pred_fallthru
          _
        %s336 = sand.u32 %s28, 1
        %s337 = scalar_lea.sflag [#allocation8], %s336
        %s338 = sand.u32 %s66, 1
        %s339 = smul.addr %s338, 8
        %s340 = scalar_lea.vmem [#allocation7], %s339
        // Predicated region
        $region41: #{tpu_custom_call.1} parent=35 // pred_check
          %p341 = pneg %p79
        $region42: #{tpu_custom_call.1} parent=35 // pred_check_branch
          %343 = sbr.rel (%p341) target = $region44
        $region43: #{tpu_custom_call.1} parent=35 // pred_region
          %345 = dma.done %s337, 128
        $region44: #{tpu_custom_call.1} parent=35 // pred_fallthru
          _
        %s346 = sand.u32 %s28, 1
        %s347 = scalar_lea.sflag [#allocation8], %s346
        %s348 = sand.u32 %s94, 1
        %s349 = smul.addr %s348, 2
        %s350 = scalar_lea.vmem [#allocation9], %s349
        // Predicated region
        $region45: #{tpu_custom_call.1} parent=35 // pred_check
          %p351 = pneg %p107
        $region46: #{tpu_custom_call.1} parent=35 // pred_check_branch
          %353 = sbr.rel (%p351) target = $region48
        $region47: #{tpu_custom_call.1} parent=35 // pred_region
          %355 = dma.done %s347, 32
        $region48: #{tpu_custom_call.1} parent=35 // pred_fallthru
          _
        // Predicated region
        $region49: #{tpu_custom_call.1} parent=35 // pred_check
          %p356 = pneg %p128
        $region50: #{tpu_custom_call.1} parent=35 // pred_check_branch
          %358 = sbr.rel (%p356) target = $region52
        $region51: #{tpu_custom_call.1} parent=35 // pred_region
          %360 = dma.done [#allocation11], 256
        $region52: #{tpu_custom_call.1} parent=35 // pred_fallthru
          _
        %s361 = sand.u32 %s36, 1
        %s362 = scalar_lea.sflag [#allocation5], %s361
        %s363 = sand.u32 %s36, 1
        %s364 = smul.addr %s363, 16
        %s365 = scalar_lea.vmem [#allocation4], %s364
        %p366 = pneg %p49
        %p367 = pneg %p46
        %s368 = sand.u32 %s28, 1
        %s369 = scalar_lea.sflag [#allocation8], %s368
        %s370 = sand.u32 %s66, 1
        %s371 = smul.addr %s370, 8
        %s372 = scalar_lea.vmem [#allocation7], %s371
        %p373 = pneg %p79
        %p374 = pneg %p76
        %s375 = sand.u32 %s28, 1
        %s376 = scalar_lea.sflag [#allocation8], %s375
        %s377 = sand.u32 %s94, 1
        %s378 = smul.addr %s377, 2
        %s379 = scalar_lea.vmem [#allocation9], %s378
        %p380 = pneg %p107
        %p381 = pneg %p104
        %p382 = pneg %p128
        %p383 = pneg %p125
        %p384 = pneg %p156
        %p385 = pneg %p153
        %s386 = sand.u32 %s143, 1
        %s387 = scalar_lea.sflag [#allocation6], %s386
        %s388 = sand.u32 %s143, 1
        %s389 = smul.addr %s388, 32
        %s390 = scalar_lea.vmem [#allocation12], %s389
        %p391 = pneg %p182
        %p392 = pneg %p179
        %p393 = scmp.lt.s32.totalorder %s28, 2
        %s394 = scalar_select %p393, %s28, 2
        %s395 = smul.addr %s394, 2
        %s396 = smul.addr %s395, 8
        %s397 = scalar_lea.vmem %s5, %s396
        %p398 = pneg %p208
        %p399 = pneg %p205
        %p400 = scmp.lt.s32.totalorder %s28, 2
        %s401 = scalar_select %p400, %s28, 2
        %s402 = smul.addr %s401, 2
        %s403 = smul.addr %s402, 8
        %s404 = scalar_lea.vmem %s6, %s403
        %s405 = smul.u32 2, %s28
        %s406 = ssub.s32 7, %s405
        %p407 = scmp.lt.s32.totalorder %s406, 2
        %s408 = scalar_select %p407, %s406, 2
        %s409 = smul.u32 8, %s408
        %s410 = sadd.s32 %s28, 1
        %s411 = smul.u32 %s410, 2
        %s412 = sadd.s32 %s28, 1
        %s413 = smul.u32 2, %s412
        %s414 = ssub.s32 9, %s413
        %p415 = scmp.lt.s32.totalorder %s414, 2
        %s416 = scalar_select %p415, %s414, 2
        %s417 = sadd.s32 %s28, 1
        %s418 = smul.u32 2, %s417
        %s419 = ssub.s32 9, %s418
        %p420 = scmp.lt.s32.totalorder %s419, 2
        %s421 = scalar_select %p420, %s419, 2
        %s422 = smul.u32 16, %s421
        %p423 = scmp.lt.s32.totalorder %s28, 2
        %s424 = scalar_select %p423, %s28, 2
        %s425 = smul.addr %s424, 2
        %s426 = smul.addr %s425, 8
        %s427 = scalar_lea.vmem %s5, %s426
        %p428 = scmp.lt.s32.totalorder %s28, 2
        %s429 = scalar_select %p428, %s28, 2
        %s430 = smul.addr %s429, 2
        %s431 = smul.addr %s430, 8
        %s432 = scalar_lea.vmem %s6, %s431
        %v434 = vld [vmem:[%s330] sm:$0xff]
        %v435 = vld [vmem:[%s330 + $0x8] sm:$0xff]
        %436 = vst [vmem:[#allocation2] sm:$0xff] %v434
        %437 = vst [vmem:[#allocation2 + $0xc] sm:$0xff] %v435
        %v438 = vld [vmem:[%s340] sm:$0xf]
        %v439 = vld [vmem:[%s340 + $0x4] sm:$0xf]
        %440 = vst [vmem:[#allocation2 + $0x8] sm:$0xf] %v438
        %441 = vst [vmem:[#allocation2 + $0x14] sm:$0xf] %v439
        %v442 = vld [vmem:[#allocation2] sm:$0xff]
        %v443 = vld [vmem:[#allocation2 + $0xc] sm:$0xff]
        %444 = vst [vmem:[#allocation3] sm:$0xff] %v442
        %445 = vst [vmem:[#allocation3 + $0x8] sm:$0xff] %v443
        %v446 = vld [vmem:[#allocation2] sm:$0xff]
        %v447 = vld [vmem:[#allocation2 + $0x8] sm:$0xf]
        %v448 = vld [vmem:[#allocation2 + $0xc] sm:$0xff]
        %v449 = vld [vmem:[#allocation2 + $0x14] sm:$0xf]
        %454 = vrot.lane.b32.xlu0 %v446, 127
        %v455 = vpop.permute.xlu0 %454
        %456 = vrot.lane.b32.xlu0 %v447, 127
        %v457 = vpop.permute.xlu0 %456
        %458 = vrot.lane.b32.xlu0 %v448, 127
        %v459 = vpop.permute.xlu0 %458
        %460 = vrot.lane.b32.xlu0 %v449, 127
        %v461 = vpop.permute.xlu0 %460
        %v462 = vrot.slane %v455, 4
        %v463 = vrot.slane %v457, 4
        %v464 = vrot.slane %v459, 4
        %v465 = vrot.slane %v461, 4
        %vm466 = vcmask 1043456
        %v467 = vsel %vm466, %v462, %v463
        %vm468 = vcmask 1039360
        %v469 = vsel %vm468, %v455, %v467
        %v470 = vsel %vm466, %v464, %v465
        %v471 = vsel %vm468, %v459, %v470
        %474 = vst [vmem:[#allocation3 + $0x10] sm:$0xff] %v469
        %475 = vst [vmem:[#allocation3 + $0x18] sm:$0xff] %v471
        %v476 = vld [vmem:[#allocation2] sm:$0xff]
        %v477 = vld [vmem:[#allocation2 + $0x8] sm:$0xf]
        %v478 = vld [vmem:[#allocation2 + $0xc] sm:$0xff]
        %v479 = vld [vmem:[#allocation2 + $0x14] sm:$0xf]
        %484 = vrot.lane.b32.xlu0 %v476, 126
        %v485 = vpop.permute.xlu0 %484
        %486 = vrot.lane.b32.xlu0 %v477, 126
        %v487 = vpop.permute.xlu0 %486
        %488 = vrot.lane.b32.xlu0 %v478, 126
        %v489 = vpop.permute.xlu0 %488
        %490 = vrot.lane.b32.xlu0 %v479, 126
        %v491 = vpop.permute.xlu0 %490
        %v492 = vrot.slane %v485, 4
        %v493 = vrot.slane %v487, 4
        %v494 = vrot.slane %v489, 4
        %v495 = vrot.slane %v491, 4
        %v496 = vsel %vm466, %v492, %v493
        %vm497 = vcmask 1031168
        %v498 = vsel %vm497, %v485, %v496
        %v499 = vsel %vm466, %v494, %v495
        %v500 = vsel %vm497, %v489, %v499
        %503 = vst [vmem:[#allocation3 + $0x20] sm:$0xff] %v498
        %504 = vst [vmem:[#allocation3 + $0x28] sm:$0xff] %v500
        %v505 = vld [vmem:[#allocation2] sm:$0xff]
        %v506 = vld [vmem:[#allocation2 + $0x8] sm:$0xf]
        %v507 = vld [vmem:[#allocation2 + $0xc] sm:$0xff]
        %v508 = vld [vmem:[#allocation2 + $0x14] sm:$0xf]
        %513 = vrot.lane.b32.xlu0 %v505, 110
        %v514 = vpop.permute.xlu0 %513
        %515 = vrot.lane.b32.xlu0 %v506, 110
        %v516 = vpop.permute.xlu0 %515
        %517 = vrot.lane.b32.xlu0 %v507, 110
        %v518 = vpop.permute.xlu0 %517
        %519 = vrot.lane.b32.xlu0 %v508, 110
        %v520 = vpop.permute.xlu0 %519
        %v521 = vrot.slane %v514, 4
        %v522 = vrot.slane %v516, 4
        %v523 = vrot.slane %v518, 4
        %v524 = vrot.slane %v520, 4
        %v525 = vsel %vm466, %v521, %v522
        %vm526 = vcmask 900096
        %v527 = vsel %vm526, %v514, %v525
        %v528 = vsel %vm466, %v523, %v524
        %v529 = vsel %vm526, %v518, %v528
        %532 = vst [vmem:[#allocation3 + $0x30] sm:$0xff] %v527
        %533 = vst [vmem:[#allocation3 + $0x38] sm:$0xff] %v529
        %v534 = vld [vmem:[#allocation2] sm:$0xff]
        %v535 = vld [vmem:[#allocation2 + $0x8] sm:$0xf]
        %v536 = vld [vmem:[#allocation2 + $0xc] sm:$0xff]
        %v537 = vld [vmem:[#allocation2 + $0x14] sm:$0xf]
        %542 = vrot.lane.b32.xlu0 %v534, 109
        %v543 = vpop.permute.xlu0 %542
        %544 = vrot.lane.b32.xlu0 %v535, 109
        %v545 = vpop.permute.xlu0 %544
        %546 = vrot.lane.b32.xlu0 %v536, 109
        %v547 = vpop.permute.xlu0 %546
        %548 = vrot.lane.b32.xlu0 %v537, 109
        %v549 = vpop.permute.xlu0 %548
        %v550 = vrot.slane %v543, 4
        %v551 = vrot.slane %v545, 4
        %v552 = vrot.slane %v547, 4
        %v553 = vrot.slane %v549, 4
        %v554 = vsel %vm466, %v550, %v551
        %vm555 = vcmask 891904
        %v556 = vsel %vm555, %v543, %v554
        %v557 = vsel %vm466, %v552, %v553
        %v558 = vsel %vm555, %v547, %v557
        %561 = vst [vmem:[#allocation3 + $0x40] sm:$0xff] %v556
        %562 = vst [vmem:[#allocation3 + $0x48] sm:$0xff] %v558
        %v563 = vld [vmem:[#allocation2] sm:$0xff]
        %v564 = vld [vmem:[#allocation2 + $0x8] sm:$0xf]
        %v565 = vld [vmem:[#allocation2 + $0xc] sm:$0xff]
        %v566 = vld [vmem:[#allocation2 + $0x14] sm:$0xf]
        %571 = vrot.lane.b32.xlu0 %v563, 108
        %v572 = vpop.permute.xlu0 %571
        %573 = vrot.lane.b32.xlu0 %v564, 108
        %v574 = vpop.permute.xlu0 %573
        %575 = vrot.lane.b32.xlu0 %v565, 108
        %v576 = vpop.permute.xlu0 %575
        %577 = vrot.lane.b32.xlu0 %v566, 108
        %v578 = vpop.permute.xlu0 %577
        %v579 = vrot.slane %v572, 4
        %v580 = vrot.slane %v574, 4
        %v581 = vrot.slane %v576, 4
        %v582 = vrot.slane %v578, 4
        %v583 = vsel %vm466, %v579, %v580
        %vm584 = vcmask 883712
        %v585 = vsel %vm584, %v572, %v583
        %v586 = vsel %vm466, %v581, %v582
        %v587 = vsel %vm584, %v576, %v586
        %590 = vst [vmem:[#allocation3 + $0x50] sm:$0xff] %v585
        %591 = vst [vmem:[#allocation3 + $0x58] sm:$0xff] %v587
        %v592 = vld [vmem:[#allocation2] sm:$0xff]
        %v593 = vld [vmem:[#allocation2 + $0x8] sm:$0xf]
        %v594 = vld [vmem:[#allocation2 + $0xc] sm:$0xff]
        %v595 = vld [vmem:[#allocation2 + $0x14] sm:$0xf]
        %600 = vrot.lane.b32.xlu0 %v592, 92
        %v601 = vpop.permute.xlu0 %600
        %602 = vrot.lane.b32.xlu0 %v593, 92
        %v603 = vpop.permute.xlu0 %602
        %604 = vrot.lane.b32.xlu0 %v594, 92
        %v605 = vpop.permute.xlu0 %604
        %606 = vrot.lane.b32.xlu0 %v595, 92
        %v607 = vpop.permute.xlu0 %606
        %v608 = vrot.slane %v601, 4
        %v609 = vrot.slane %v603, 4
        %v610 = vrot.slane %v605, 4
        %v611 = vrot.slane %v607, 4
        %v612 = vsel %vm466, %v608, %v609
        %vm613 = vcmask 752640
        %v614 = vsel %vm613, %v601, %v612
        %v615 = vsel %vm466, %v610, %v611
        %v616 = vsel %vm613, %v605, %v615
        %619 = vst [vmem:[#allocation3 + $0x60] sm:$0xff] %v614
        %620 = vst [vmem:[#allocation3 + $0x68] sm:$0xff] %v616
        %v621 = vld [vmem:[#allocation2] sm:$0xff]
        %v622 = vld [vmem:[#allocation2 + $0x8] sm:$0xf]
        %v623 = vld [vmem:[#allocation2 + $0xc] sm:$0xff]
        %v624 = vld [vmem:[#allocation2 + $0x14] sm:$0xf]
        %629 = vrot.lane.b32.xlu0 %v621, 91
        %v630 = vpop.permute.xlu0 %629
        %631 = vrot.lane.b32.xlu0 %v622, 91
        %v632 = vpop.permute.xlu0 %631
        %633 = vrot.lane.b32.xlu0 %v623, 91
        %v634 = vpop.permute.xlu0 %633
        %635 = vrot.lane.b32.xlu0 %v624, 91
        %v636 = vpop.permute.xlu0 %635
        %v637 = vrot.slane %v630, 4
        %v638 = vrot.slane %v632, 4
        %v639 = vrot.slane %v634, 4
        %v640 = vrot.slane %v636, 4
        %v641 = vsel %vm466, %v637, %v638
        %vm642 = vcmask 744448
        %v643 = vsel %vm642, %v630, %v641
        %v644 = vsel %vm466, %v639, %v640
        %v645 = vsel %vm642, %v634, %v644
        %648 = vst [vmem:[#allocation3 + $0x70] sm:$0xff] %v643
        %649 = vst [vmem:[#allocation3 + $0x78] sm:$0xff] %v645
        %v650 = vld [vmem:[#allocation2] sm:$0xff]
        %v651 = vld [vmem:[#allocation2 + $0x8] sm:$0xf]
        %v652 = vld [vmem:[#allocation2 + $0xc] sm:$0xff]
        %v653 = vld [vmem:[#allocation2 + $0x14] sm:$0xf]
        %658 = vrot.lane.b32.xlu0 %v650, 90
        %v659 = vpop.permute.xlu0 %658
        %660 = vrot.lane.b32.xlu0 %v651, 90
        %v661 = vpop.permute.xlu0 %660
        %662 = vrot.lane.b32.xlu0 %v652, 90
        %v663 = vpop.permute.xlu0 %662
        %664 = vrot.lane.b32.xlu0 %v653, 90
        %v665 = vpop.permute.xlu0 %664
        %v666 = vrot.slane %v659, 4
        %v667 = vrot.slane %v661, 4
        %v668 = vrot.slane %v663, 4
        %v669 = vrot.slane %v665, 4
        %v670 = vsel %vm466, %v666, %v667
        %vm671 = vcmask 736256
        %v672 = vsel %vm671, %v659, %v670
        %v673 = vsel %vm466, %v668, %v669
        %v674 = vsel %vm671, %v663, %v673
        %677 = vst [vmem:[#allocation3 + $0x80] sm:$0xff] %v672
        %678 = vst [vmem:[#allocation3 + $0x88] sm:$0xff] %v674
        %v679 = vld [vmem:[#allocation10] sm:$0xff]
        %v680 = vld [vmem:[#allocation10 + $0x8] sm:$0xff]
        %v681 = vld [vmem:[#allocation3] sm:$0xff]
        %v682 = vld [vmem:[#allocation3 + $0x8] sm:$0xff]
        %v683 = vld [vmem:[#allocation3 + $0x10] sm:$0xff]
        %v684 = vld [vmem:[#allocation3 + $0x18] sm:$0xff]
        %v685 = vld [vmem:[#allocation3 + $0x20] sm:$0xff]
        %v686 = vld [vmem:[#allocation3 + $0x28] sm:$0xff]
        %v687 = vld [vmem:[#allocation3 + $0x30] sm:$0xff]
        %v688 = vld [vmem:[#allocation3 + $0x38] sm:$0xff]
        %v689 = vld [vmem:[#allocation3 + $0x40] sm:$0xff]
        %v690 = vld [vmem:[#allocation3 + $0x48] sm:$0xff]
        %v691 = vld [vmem:[#allocation3 + $0x50] sm:$0xff]
        %v692 = vld [vmem:[#allocation3 + $0x58] sm:$0xff]
        %v693 = vld [vmem:[#allocation3 + $0x60] sm:$0xff]
        %v694 = vld [vmem:[#allocation3 + $0x68] sm:$0xff]
        %v695 = vld [vmem:[#allocation3 + $0x70] sm:$0xff]
        %v696 = vld [vmem:[#allocation3 + $0x78] sm:$0xff]
        %v697 = vld [vmem:[#allocation3 + $0x80] sm:$0xff]
        %v698 = vld [vmem:[#allocation3 + $0x88] sm:$0xff]
        %v701 = vunpack.c.l.b16 %v679
        %v702 = vunpack.c.h.b16 %v679
        %v703 = vunpack.c.l.b16 %v680
        %v704 = vunpack.c.h.b16 %v680
        %v705 = vpack.c.b16 %v703, %v701
        %v706 = vpack.c.b16 %v704, %v702
        %v726 = vunpack.c.l.b16 %v681
        %v727 = vunpack.c.h.b16 %v681
        %v728 = vunpack.c.l.b16 %v682
        %v729 = vunpack.c.h.b16 %v682
        %v730 = vunpack.c.l.b16 %v683
        %v731 = vunpack.c.h.b16 %v683
        %v732 = vunpack.c.l.b16 %v684
        %v733 = vunpack.c.h.b16 %v684
        %v734 = vunpack.c.l.b16 %v685
        %v735 = vunpack.c.h.b16 %v685
        %v736 = vunpack.c.l.b16 %v686
        %v737 = vunpack.c.h.b16 %v686
        %v738 = vunpack.c.l.b16 %v687
        %v739 = vunpack.c.h.b16 %v687
        %v740 = vunpack.c.l.b16 %v688
        %v741 = vunpack.c.h.b16 %v688
        %v742 = vunpack.c.l.b16 %v689
        %v743 = vunpack.c.h.b16 %v689
        %v744 = vunpack.c.l.b16 %v690
        %v745 = vunpack.c.h.b16 %v690
        %v746 = vunpack.c.l.b16 %v691
        %v747 = vunpack.c.h.b16 %v691
        %v748 = vunpack.c.l.b16 %v692
        %v749 = vunpack.c.h.b16 %v692
        %v750 = vunpack.c.l.b16 %v693
        %v751 = vunpack.c.h.b16 %v693
        %v752 = vunpack.c.l.b16 %v694
        %v753 = vunpack.c.h.b16 %v694
        %v754 = vunpack.c.l.b16 %v695
        %v755 = vunpack.c.h.b16 %v695
        %v756 = vunpack.c.l.b16 %v696
        %v757 = vunpack.c.h.b16 %v696
        %v758 = vunpack.c.l.b16 %v697
        %v759 = vunpack.c.h.b16 %v697
        %v760 = vunpack.c.l.b16 %v698
        %v761 = vunpack.c.h.b16 %v698
        %v762 = vpack.c.b16 %v728, %v726
        %v763 = vpack.c.b16 %v729, %v727
        %v764 = vpack.c.b16 %v732, %v730
        %v765 = vpack.c.b16 %v733, %v731
        %v766 = vpack.c.b16 %v736, %v734
        %v767 = vpack.c.b16 %v737, %v735
        %v768 = vpack.c.b16 %v740, %v738
        %v769 = vpack.c.b16 %v741, %v739
        %v770 = vpack.c.b16 %v744, %v742
        %v771 = vpack.c.b16 %v745, %v743
        %v772 = vpack.c.b16 %v748, %v746
        %v773 = vpack.c.b16 %v749, %v747
        %v774 = vpack.c.b16 %v752, %v750
        %v775 = vpack.c.b16 %v753, %v751
        %v776 = vpack.c.b16 %v756, %v754
        %v777 = vpack.c.b16 %v757, %v755
        %v778 = vpack.c.b16 %v760, %v758
        %v779 = vpack.c.b16 %v761, %v759
        %vm798 = vcmask 130048
        %v800 = vsel %vm798, %v706, 0
        %802 = vmatpush.bf16.msra.mxu0 %v776
        %803 = vmatpush.bf16.msra.mxu0 %v774
        %804 = vmatpush.bf16.msra.mxu0 %v772
        %805 = vmatpush.bf16.msra.mxu0 %v770
        %806 = vmatpush.bf16.msra.mxu0 %v768
        %807 = vmatpush.bf16.msra.mxu0 %v766
        %808 = vmatpush.bf16.msra.mxu0 %v764
        %809 = vmatpush.bf16.msra.mxu0 %v762
        %810 = vmatmul.bf16.gmra.mxu0 %v705
        %v811 = vpop.f32.mrf.mxu0
        %v812 = vadd.f32 0.0, %v811
        %v813 = vpop.f32.mrf.mxu0
        %v814 = vadd.f32 0.0, %v813
        %815 = vdwg.mxu0
        %816 = vmatpush.bf16.msra.mxu0 0
        %817 = vmatpush.bf16.msra.mxu0 0
        %818 = vmatpush.bf16.msra.mxu0 0
        %819 = vmatpush.bf16.msra.mxu0 0
        %820 = vmatpush.bf16.msra.mxu0 0
        %821 = vmatpush.bf16.msra.mxu0 0
        %822 = vmatpush.bf16.msra.mxu0 0
        %823 = vmatpush.bf16.msra.mxu0 %v778
        %824 = vmatmul.bf16.gmra.mxu0 %v800
        %v825 = vpop.f32.mrf.mxu0
        %v826 = vadd.f32 %v812, %v825
        %v827 = vpop.f32.mrf.mxu0
        %v828 = vadd.f32 %v814, %v827
        %829 = vdwg.mxu0
        %830 = vmatpush.bf16.msra.mxu0 %v777
        %831 = vmatpush.bf16.msra.mxu0 %v775
        %832 = vmatpush.bf16.msra.mxu0 %v773
        %833 = vmatpush.bf16.msra.mxu0 %v771
        %834 = vmatpush.bf16.msra.mxu0 %v769
        %835 = vmatpush.bf16.msra.mxu0 %v767
        %836 = vmatpush.bf16.msra.mxu0 %v765
        %837 = vmatpush.bf16.msra.mxu0 %v763
        %838 = vmatmul.bf16.gmra.mxu0 %v705
        %v839 = vpop.f32.mrf.mxu0
        %v840 = vadd.f32 0.0, %v839
        %v841 = vpop.f32.mrf.mxu0
        %v842 = vadd.f32 0.0, %v841
        %843 = vdwg.mxu0
        %844 = vmatpush.bf16.msra.mxu0 0
        %845 = vmatpush.bf16.msra.mxu0 0
        %846 = vmatpush.bf16.msra.mxu0 0
        %847 = vmatpush.bf16.msra.mxu0 0
        %848 = vmatpush.bf16.msra.mxu0 0
        %849 = vmatpush.bf16.msra.mxu0 0
        %850 = vmatpush.bf16.msra.mxu0 0
        %851 = vmatpush.bf16.msra.mxu0 %v779
        %852 = vmatmul.bf16.gmra.mxu0 %v800
        %v853 = vpop.f32.mrf.mxu0
        %v854 = vadd.f32 %v840, %v853
        %v855 = vpop.f32.mrf.mxu0
        %v856 = vadd.f32 %v842, %v855
        %857 = vdwg.mxu0
        %v858 = vld [vmem:[%s350] sm:$0x3]
        %v860 = vperm.slane %v858, 0
        %v861 = vperm.slane %v858, 1
        %v864 = vmul.f32 %v826, %v860
        %v865 = vmul.f32 %v854, %v861
        %v866 = vmul.f32 %v828, %v860
        %v867 = vmul.f32 %v856, %v861
        %v868 = vadd.f32 %v864, %v865
        %869 = vadd.xlane.f32.xlu0 %v868
        %v870 = vpop.xlane.xlu0 %869
        %v871 = vadd.f32 %v866, %v867
        %872 = vadd.xlane.f32.xlu0 %v871
        %v873 = vpop.xlane.xlu0 %872
        %vm874 = vcmask 7168
        %875 = vst.msk [vmem:[%s427] sm:$0xff] %vm874, %v870
        %876 = vst.msk [vmem:[%s427 + $0x8] sm:$0xff] %vm874, %v873
        %v877 = vmul.f32 %v864, %v826
        %v878 = vmul.f32 %v865, %v854
        %v879 = vmul.f32 %v866, %v828
        %v880 = vmul.f32 %v867, %v856
        %v881 = vadd.f32 %v877, %v878
        %882 = vadd.xlane.f32.xlu0 %v881
        %v883 = vpop.xlane.xlu0 %882
        %v884 = vadd.f32 %v879, %v880
        %885 = vadd.xlane.f32.xlu0 %v884
        %v886 = vpop.xlane.xlu0 %885
        %887 = vst.msk [vmem:[%s432] sm:$0xff] %vm874, %v883
        %888 = vst.msk [vmem:[%s432 + $0x8] sm:$0xff] %vm874, %v886
        %889 = vst [vmem:[%s390] sm:$0xff] %v826
        %890 = vst [vmem:[%s390 + $0x8] sm:$0xff] %v854
        %891 = vst [vmem:[%s390 + $0x10] sm:$0xff] %v828
        %892 = vst [vmem:[%s390 + $0x18] sm:$0xff] %v856
        %s893 = sand.u32 %s143, 1
        %s894 = scalar_lea.sflag [#allocation6], %s893
        %s895 = sand.u32 %s143, 1
        %s896 = smul.addr %s895, 32
        %s897 = scalar_lea.vmem [#allocation12], %s896
        %p898 = scmp.lt.s32.totalorder %s28, 2
        %s899 = scalar_select %p898, %s28, 2
        %s900 = smul.addr %s899, 2
        %s901 = smul.addr %s900, 8
        %s902 = scalar_lea.vmem %s5, %s901
        %p903 = scmp.lt.s32.totalorder %s28, 2
        %s904 = scalar_select %p903, %s28, 2
        %s905 = smul.addr %s904, 2
        %s906 = smul.addr %s905, 8
        %s907 = scalar_lea.vmem %s6, %s906
        // Predicated region
        $region53: #{tpu_custom_call.1} parent=35 // pred_check
          %p908 = pneg %p153
        $region54: #{tpu_custom_call.1} parent=35 // pred_check_branch
          %910 = sbr.rel (%p908) target = $region56
        $region55: #{tpu_custom_call.1} parent=35 // pred_region
          %s911 = sadd.s32 %s28, 1
          %s912 = smul.u32 2, %s911
          %s913 = ssub.s32 9, %s912
          %p914 = scmp.lt.s32.totalorder %s913, 2
          %s915 = scalar_select %p914, %s913, 2
          %s916 = smul.u32 16, %s915
          %s917 = ssub.s32 32, %s916
          %s918 = sshll.u32 %s917, 4
          %919 = vsyncadd %s894, %s918
          %p920 = scmp.ne.s32.totalorder 0, %s916
          %s921 = smul.addr %s912, 8
          %s922 = scalar_lea.hbm %s4, %s921
          %s923 = smul.u32 %s915, 8
          %s924 = smul.u32 %s923, 2
          %s925 = sshll.u32 %s897, 4
          %s926 = int_to_ptr.vmem [resolvable:$true] %s925
          %s927 = sshll.u32 %s922, 4
          %s928 = int_to_ptr.hbm [resolvable:$true] %s927
          %s929 = sshll.u32 %s924, 4
          %933 = dma.vmem_to_hbm [thread:$0]  (%p920), %s926, %s929, %s928, %s894, 256, 1152, %s923
        $region56: #{tpu_custom_call.1} parent=35 // pred_fallthru
          _
        // Predicated region
        $region57: #{tpu_custom_call.1} parent=35 // pred_check
          %p934 = pneg %p179
        $region58: #{tpu_custom_call.1} parent=35 // pred_check_branch
          %936 = sbr.rel (%p934) target = $region60
        $region59: #{tpu_custom_call.1} parent=35 // pred_region
          _
        $region60: #{tpu_custom_call.1} parent=35 // pred_fallthru
          _
        // Predicated region
        $region61: #{tpu_custom_call.1} parent=35 // pred_check
          %p937 = pneg %p205
        $region62: #{tpu_custom_call.1} parent=35 // pred_check_branch
          %939 = sbr.rel (%p937) target = $region64
        $region63: #{tpu_custom_call.1} parent=35 // pred_region
          _
        $region64: #{tpu_custom_call.1} parent=35 // pred_fallthru
          _
      $region36: #{tpu_custom_call.1} parent=5 // pred_fallthru
        _
      %p940 = scmp.le.s32.totalorder 2, %s23
      // Predicated region
      $region65: #{tpu_custom_call.1} parent=5 // pred_check
        %p941 = pneg %p940
      $region66: #{tpu_custom_call.1} parent=5 // pred_check_branch
        %943 = sbr.rel (%p941) target = $region68
      $region67: #{tpu_custom_call.1} parent=5 // pred_region
        %s944 = ssub.s32 %s23, 2
        // Predicated region
        $region69: #{tpu_custom_call.1} parent=67 // pred_check
          %p945 = pneg %p159
        $region70: #{tpu_custom_call.1} parent=67 // pred_check_branch
          %947 = sbr.rel (%p945) target = $region72
        $region71: #{tpu_custom_call.1} parent=67 // pred_region
          %s948 = sand.u32 %s144, 1
          %s949 = scalar_lea.sflag [#allocation6], %s948
          %s950 = sand.u32 %s144, 1
          %s951 = smul.addr %s950, 32
          %s952 = scalar_lea.vmem [#allocation12], %s951
          %954 = dma.done %s949, 512
        $region72: #{tpu_custom_call.1} parent=67 // pred_fallthru
          _
        // Predicated region
        $region73: #{tpu_custom_call.1} parent=67 // pred_check
          %p955 = pneg %p185
        $region74: #{tpu_custom_call.1} parent=67 // pred_check_branch
          %957 = sbr.rel (%p955) target = $region76
        $region75: #{tpu_custom_call.1} parent=67 // pred_region
          %p958 = scmp.lt.s32.totalorder %s29, 2
          %s959 = scalar_select %p958, %s29, 2
          %s960 = smul.addr %s959, 2
          %s961 = smul.addr %s960, 8
          %s962 = scalar_lea.vmem %s5, %s961
        $region76: #{tpu_custom_call.1} parent=67 // pred_fallthru
          _
        // Predicated region
        $region77: #{tpu_custom_call.1} parent=67 // pred_check
          %p963 = pneg %p211
        $region78: #{tpu_custom_call.1} parent=67 // pred_check_branch
          %965 = sbr.rel (%p963) target = $region80
        $region79: #{tpu_custom_call.1} parent=67 // pred_region
          %p966 = scmp.lt.s32.totalorder %s29, 2
          %s967 = scalar_select %p966, %s29, 2
          %s968 = smul.addr %s967, 2
          %s969 = smul.addr %s968, 8
          %s970 = scalar_lea.vmem %s6, %s969
        $region80: #{tpu_custom_call.1} parent=67 // pred_fallthru
          _
      $region68: #{tpu_custom_call.1} parent=5 // pred_fallthru
        _
    $region6: #{tpu_custom_call.1} parent=1 // loop_footer
      %s27 = sadd.s32 1, %s23
    $region7: #{tpu_custom_call.1} parent=1 // loop_footer_branch
      %22 = sbr.rel target = $region3
    $region8: #{tpu_custom_call.1} parent=1 // loop_exit
      _
    %971 = vsyncpa [#allocation5], 1
    %s972 = scalar_lea.sflag [#allocation5], 1
    %973 = vsyncpa %s972, 1
    %974 = vsyncpa [#allocation8], 1
    %s975 = scalar_lea.sflag [#allocation8], 1
    %976 = vsyncpa %s975, 1
    %977 = vsyncpa [#allocation11], 1
    %978 = vsyncpa [#allocation6], 1
    %s979 = scalar_lea.sflag [#allocation6], 1
    %980 = vsyncpa %s979, 1

</llo_original>
